<compile_context>
chip_gen: v7x
topology: tpu7x:2x2x1
jax: 0.10.0
libtpu: 0.0.40
codegen_flags: <defaults>
</compile_context>

<pallas_src>
import math
import functools

import numpy as np
import jax
import jax.numpy as jnp
from jax import lax
from jax.experimental import pallas as pl
from jax.experimental.pallas import tpu as pltpu

EPS = 1e-7
_LOGIT_CLAMP = math.log((1.0 - EPS) / EPS)


# ---------------------------------------------------------------------------
# tiling helpers
# ---------------------------------------------------------------------------
def _round_up(x, m):
    return ((x + m - 1) // m) * m


def _pick_tq(hw, batch):
    """Query/lane tile: as large as possible (mk/mv HBM restream scales with
    HW/tq) while keeping lane padding <= ~12.5% and, for B == 1, at least two
    query tiles so both v7x TensorCores get work."""
    cap = _round_up(hw, 128) * 9 // 8
    for c in (2048, 1024, 512, 256, 128):
        hwp = _round_up(hw, c)
        if hwp > cap:
            continue
        if batch == 1 and hwp // c < 2:
            continue
        return c
    return 128


def _pick_tk(thw):
    """Memory tile: moderate (bounds the (tk, tq) f32 temporaries -> vreg/VMEM
    pressure, especially on v5e's single vector-store slot)."""
    if _round_up(thw, 256) <= _round_up(thw, 128) * 9 // 8:
        return 256
    return 128


def _pick_lane_tile(n, prefs=(1024, 2048, 512, 4096, 256, 128)):
    for p in prefs:
        if n % p == 0:
            return p
    return n


# ---------------------------------------------------------------------------
# Fused: MemoryReader.get_affinity + readout + 1x1 decoder head
#   out = W1 @ (mv @ softmax_THW(score)) + W2 @ qv
# Affinity never touches HBM.  Score is built entirely on the MXU:
#   mk_aug rows = [mk | hi/lo(|mk|^2/sqrt(CK)) | 1]
#   qk_aug rows = [qk*2/sqrt(CK) | -1 | -1 | -|qk|^2/sqrt(CK)]
#   => dot = (2 mk.qk - |mk|^2 - |qk|^2)/sqrt(CK) = -|mk-qk|^2/sqrt(CK)  <= ~0
# so no running max is needed.  The value operand mv_aug = [W1@mv | 1] also puts
# the softmax denominator on the MXU (last accumulator row).
# ---------------------------------------------------------------------------
def _fused_read_head_kernel(mk_ref, qk_ref, mv_ref, qvh_ref, out_ref, acc_sc, *,
                            cout):
    ki = pl.program_id(2)

    @pl.when(ki == 0)
    def _():
        acc_sc[...] = jnp.zeros_like(acc_sc)

    mk = mk_ref[0]                                         # (CK+3, TK) bf16
    qk = qk_ref[0]                                         # (CK+3, TQ) bf16
    # MXU: s = -|mk - qk|^2 / sqrt(CK) (+ bf16 rounding), no scale/max/sum on VPU
    s = lax.dot_general(mk, qk, (((0,), (0,)), ((), ())),
                        preferred_element_type=jnp.float32)        # (TK, TQ)
    p = jnp.exp(s).astype(jnp.bfloat16)                            # EUP only

    mv = mv_ref[0]                                         # (COUT+1, TK) bf16
    acc_sc[...] += jnp.dot(mv, p, preferred_element_type=jnp.float32)

    @pl.when(ki == pl.num_programs(2) - 1)
    def _():
        # last accumulator row is sum(p) (denominator); floor guards underflow
        l = jnp.maximum(acc_sc[cout:cout + 1, :], 1e-30)           # (1, TQ)
        inv_l = pl.reciprocal(l, approx=True)                      # EUP slot
        out_ref[0] = (acc_sc[:cout, :] * inv_l + qvh_ref[0]).astype(out_ref.dtype)


def fused_memory_read_head(mk, qk, mv, qv, w, *, tq=None, tk=None):
    """mk: (B,CK,T,H,W), qk: (B,CK,H,W), mv: (B,CV,T,H,W), qv: (B,CV,H,W),
    w: (COUT, 2*CV)  ->  (B, COUT, H, W)  ==  w @ concat([readout(mv, aff), qv])."""
    B, CK, T, H, W = mk.shape
    CV = mv.shape[1]
    COUT = w.shape[0]
    HW, THW = H * W, T * H * W
    inv_sqrt_ck = 1.0 / math.sqrt(CK)

    tq = tq or _pick_tq(HW, B)
    tk = tk or _pick_tk(THW)
    assert tq % 128 == 0 and tk % 128 == 0
    HWp, THWp = _round_up(HW, tq), _round_up(THW, tk)
    nq, nk = HWp // tq, THWp // tk

    mkf = mk.reshape(B, CK, THW).astype(jnp.float32)
    qkf = qk.reshape(B, CK, HW).astype(jnp.float32)
    mvf = mv.reshape(B, CV, THW).astype(jnp.float32)
    qvf = qv.reshape(B, CV, HW).astype(jnp.float32)
    w = w.astype(jnp.float32)

    if THWp != THW:
        pad = ((0, 0), (0, 0), (0, THWp - THW))
        mkf, mvf = jnp.pad(mkf, pad), jnp.pad(mvf, pad)
    if HWp != HW:
        pad = ((0, 0), (0, 0), (0, HWp - HW))
        qkf, qvf = jnp.pad(qkf, pad), jnp.pad(qvf, pad)

    # memory-key side: [mk | hi/lo split of |mk|^2/sqrt(CK) | ones]
    d = jnp.sum(mkf * mkf, axis=1, keepdims=True) * inv_sqrt_ck       # (B,1,THWp)
    if THWp != THW:   # mask padded memory positions -> exp(-huge) == 0
        d = jnp.where(jnp.arange(THWp)[None, None, :] >= THW,
                      jnp.float32(1e30), d)
    d_hi = d.astype(jnp.bfloat16)
    d_lo = (d - d_hi.astype(jnp.float32)).astype(jnp.bfloat16)
    mk_aug = jnp.concatenate(
        [mkf.astype(jnp.bfloat16), d_hi, d_lo,
         jnp.ones((B, 1, THWp), jnp.bfloat16)], axis=1)               # (B,CK+3,THWp)

    # query-key side: [qk * 2/sqrt(CK) | -1 | -1 | -|qk|^2/sqrt(CK)]
    b_sq = jnp.sum(qkf * qkf, axis=1, keepdims=True) * inv_sqrt_ck    # (B,1,HWp)
    qk_aug = jnp.concatenate(
        [qkf * (2.0 * inv_sqrt_ck),
         jnp.full((B, 2, HWp), -1.0, jnp.float32), -b_sq],
        axis=1).astype(jnp.bfloat16)                                  # (B,CK+3,HWp)
    cke = CK + 3

    # fold the linear head: stream COUT+1 rows instead of CV, denom row = ones
    w1, w2 = w[:, :CV], w[:, CV:]
    mv_aug = jnp.concatenate(
        [jnp.einsum("oc,bct->bot", w1, mvf),
         jnp.ones((B, 1, THWp), jnp.float32)], axis=1).astype(jnp.bfloat16)
    qv_head = jnp.einsum("oc,bcq->boq", w2, qvf)                      # (B,COUT,HWp)

    # VMEM budget: double-buffered blocks + (tk,tq) elementwise temps + scratch.
    blk = cke * (tk + tq) * 2 + (COUT + 1) * tk * 2 + 2 * COUT * tq * 4
    tmp = 3 * tk * tq * 4
    scratch = (COUT + 1) * tq * 4
    need = 2 * blk + tmp + scratch + (4 << 20)
    try:
        vmem_cap = getattr(pltpu.get_tpu_info(), "vmem_capacity_bytes", 64 << 20)
    except Exception:
        vmem_cap = 64 << 20                      # v7x: 64 MiB per TensorCore
    vmem_limit = int(min(max(need, 16 << 20), vmem_cap * 6 // 10, 40 << 20))

    cost = pl.CostEstimate(
        flops=int(2 * B * THWp * HWp * (cke + COUT + 1)),
        transcendentals=int(B * THWp * HWp),
        bytes_accessed=int(nq * (mk_aug.size + mv_aug.size) * 2
                           + qk_aug.size * 2 + qv_head.size * 4
                           + B * COUT * HWp * 4))

    kernel = functools.partial(_fused_read_head_kernel, cout=COUT)
    out = pl.pallas_call(
        kernel,
        out_shape=jax.ShapeDtypeStruct((B, COUT, HWp), jnp.float32),
        grid=(B, nq, nk),
        in_specs=[
            pl.BlockSpec((1, cke, tk), lambda b, qi, ki: (b, 0, ki)),       # mk_aug
            pl.BlockSpec((1, cke, tq), lambda b, qi, ki: (b, 0, qi)),       # qk_aug
            pl.BlockSpec((1, COUT + 1, tk), lambda b, qi, ki: (b, 0, ki)),  # mv_aug
            pl.BlockSpec((1, COUT, tq), lambda b, qi, ki: (b, 0, qi)),      # qv_head
        ],
        out_specs=pl.BlockSpec((1, COUT, tq), lambda b, qi, ki: (b, 0, qi)),
        scratch_shapes=[pltpu.VMEM((COUT + 1, tq), jnp.float32)],
        compiler_params=pltpu.CompilerParams(
            dimension_semantics=("parallel", "parallel", "arbitrary"),
            vmem_limit_bytes=vmem_limit),
        cost_estimate=cost,
    )(mk_aug, qk_aug, mv_aug, qv_head)
    return out[:, :, :HW].reshape(B, COUT, H, W)


# ---------------------------------------------------------------------------
# FSVS.aggregate with the preceding sigmoid fused in (lane-dense, tiled over H*W)
#   foreground rows: logit(clip(sigmoid(x))) == clip(x)  -> no transcendentals
#   background row:  prod_k sigmoid(-x_k), then logit     -> only EUP user
# ---------------------------------------------------------------------------
def _aggregate_sigmoid_kernel(x_ref, out_ref):
    x = x_ref[0]                                              # (K, TL) logits
    fg = jnp.clip(x, -_LOGIT_CLAMP, _LOGIT_CLAMP)
    bg = jnp.prod(jax.nn.sigmoid(-x), axis=0, keepdims=True)  # prod_k (1 - p_k)
    bg = jnp.clip(bg, EPS, 1.0 - EPS)
    out_ref[0] = jnp.concatenate([jnp.log(bg) - jnp.log(1.0 - bg), fg], axis=0)


def aggregate_sigmoid(logits):
    """logits: (B, K, H, W) -> aggregate(sigmoid(logits)) : (B, K+1, H, W)."""
    B, K, H, W = logits.shape
    HW = H * W
    tl = _pick_lane_tile(HW)
    xf = logits.reshape(B, K, HW)
    out = pl.pallas_call(
        _aggregate_sigmoid_kernel,
        out_shape=jax.ShapeDtypeStruct((B, K + 1, HW), jnp.float32),
        grid=(B, HW // tl),
        in_specs=[pl.BlockSpec((1, K, tl), lambda b, q: (b, 0, q))],
        out_specs=pl.BlockSpec((1, K + 1, tl), lambda b, q: (b, 0, q)),
        compiler_params=pltpu.CompilerParams(
            dimension_semantics=("parallel", "parallel")),
    )(xf)
    return out.reshape(B, K + 1, H, W)


# ---------------------------------------------------------------------------
# Soft_aggregation (lane-dense, tiled over H*W)
# ---------------------------------------------------------------------------
def _soft_agg_kernel(ps_ref, out_ref, *, max_obj):
    ps = ps_ref[...]                                          # (NO, TL) probs
    no = ps.shape[0]
    bg = jnp.prod(1.0 - ps, axis=0, keepdims=True)
    parts = [bg, ps]
    if max_obj > no:
        parts.append(jnp.zeros((max_obj - no, ps.shape[1]), ps.dtype))
    em = jnp.clip(jnp.concatenate(parts, axis=0), EPS, 1.0 - EPS)
    out_ref[0] = jnp.log(em) - jnp.log(1.0 - em)


def soft_aggregation(ps, max_obj):
    """ps: (num_objects, H, W) -> logits (1, max_obj+1, H, W)."""
    NO, H, W = ps.shape
    HW = H * W
    tl = _pick_lane_tile(HW)
    psf = ps.reshape(NO, HW)
    out = pl.pallas_call(
        functools.partial(_soft_agg_kernel, max_obj=max_obj),
        out_shape=jax.ShapeDtypeStruct((1, max_obj + 1, HW), jnp.float32),
        grid=(HW // tl,),
        in_specs=[pl.BlockSpec((NO, tl), lambda q: (0, q))],
        out_specs=pl.BlockSpec((1, max_obj + 1, tl), lambda q: (0, 0, q)),
        compiler_params=pltpu.CompilerParams(dimension_semantics=("parallel",)),
    )(psf)
    return out.reshape(1, max_obj + 1, H, W)


# ---------------------------------------------------------------------------
# FSVS (single_object=True) "segment" path
# ---------------------------------------------------------------------------
class FSVSPallas:
    def __init__(self, key, cv, max_obj=2):
        self.max_obj = max_obj
        # deterministic synthetic weights for the stand-in decoder head:
        # 4 output channels = [pred(2), SIE_pred(1), boundary(1)]
        self.head_w = 0.05 * jax.random.normal(key, (4, 2 * cv), dtype=jnp.float32)

    def segment(self, qk16, qv16, qf8, qf4, mk16, mv16):
        # Fused affinity + readout + 1x1 head: affinity never hits HBM.
        head = fused_memory_read_head(mk16, qk16, mv16, qv16, self.head_w)

        # TODO(synk): real Decoder (ResBlock/UpsampleBlock/HFM + encoders/LFM) not
        # available in the reference source; stand-in head + bilinear 4x upsample.
        B, C, H, W = head.shape
        head = jax.image.resize(head, (B, C, 4 * H, 4 * W), method="bilinear")

        logits_mask = head[:, 0:2]
        logits_sie = head[:, 2:3]
        boundary = head[:, 3:4]

        prob = jax.nn.softmax(logits_mask, axis=1)[:, 1]           # (B, 4H, 4W)

        logits_SIE = aggregate_sigmoid(logits_sie)                 # Pallas (sigmoid fused)
        prob_SIE = jax.nn.softmax(logits_SIE, axis=1)[:, 1:]

        logits = soft_aggregation(prob, self.max_obj)              # Pallas
        prob_full = jax.nn.softmax(logits, axis=1)
        return logits, prob_full, boundary, logits_SIE, prob_SIE


# ---------------------------------------------------------------------------
# Pure-JAX references (for correctness checking of the Pallas kernels)
# ---------------------------------------------------------------------------
def ref_get_affinity(mk, qk):
    B, CK = mk.shape[:2]
    mkf = mk.reshape(B, CK, -1)
    qkf = qk.reshape(B, CK, -1)
    a_sq = jnp.sum(mkf ** 2, axis=1)[:, :, None]
    ab = jnp.einsum("bct,bcq->btq", mkf, qkf)
    aff = (2.0 * ab - a_sq) / math.sqrt(CK)
    return jax.nn.softmax(aff, axis=1)


def ref_fused_head(mk, qk, mv, qv, w):
    aff = ref_get_affinity(mk, qk)                                 # (B, THW, HW)
    B, CV, T, H, W = mv.shape
    mem = jnp.einsum("bct,btq->bcq", mv.reshape(B, CV, -1), aff)   # (B, CV, HW)
    cat = jnp.concatenate([mem, qv.reshape(B, CV, -1)], axis=1)    # (B, 2CV, HW)
    head = jnp.einsum("oc,bcq->boq", w, cat)
    return head.reshape(B, w.shape[0], H, W)


def ref_aggregate(prob):
    newp = jnp.concatenate(
        [jnp.prod(1.0 - prob, axis=1, keepdims=True), prob], axis=1)
    newp = jnp.clip(newp, EPS, 1.0 - EPS)
    return jnp.log(newp / (1.0 - newp))


def ref_soft_aggregation(ps, max_obj):
    NO, H, W = ps.shape
    em = jnp.zeros((1, max_obj + 1, H, W), jnp.float32)
    em = em.at[0, 0].set(jnp.prod(1.0 - ps, axis=0))
    em = em.at[0, 1:NO + 1].set(ps)
    em = jnp.clip(em, EPS, 1.0 - EPS)
    return jnp.log(em / (1.0 - em))


# ---------------------------------------------------------------------------
if __name__ == "__main__":
    key = jax.random.PRNGKey(0)
    k_mk, k_qk, k_mv, k_qv, k_w = jax.random.split(key, 5)

    # small shapes consistent with FSVS.segment semantics
    B, CK, CV, T, H, W = 1, 16, 32, 2, 8, 32
    MAX_OBJ = 2

    mk16 = jax.random.normal(k_mk, (B, CK, T, H, W), dtype=jnp.float32)
    qk16 = jax.random.normal(k_qk, (B, CK, H, W), dtype=jnp.float32)
    mv16 = jax.random.normal(k_mv, (B, CV, T, H, W), dtype=jnp.float32)
    qv16 = jax.random.normal(k_qv, (B, CV, H, W), dtype=jnp.float32)
    qf8 = jnp.zeros((B, 8, 2 * H, 2 * W), jnp.float32)   # unused placeholder
    qf4 = jnp.zeros((B, 8, 4 * H, 4 * W), jnp.float32)   # unused placeholder

    model = FSVSPallas(k_w, cv=CV, max_obj=MAX_OBJ)

    # --- fused affinity + readout + head kernel vs pure-JAX reference ---
    # tq=tk=128 forces multiple query tiles and multiple reduction steps.
    head = jax.block_until_ready(
        fused_memory_read_head(mk16, qk16, mv16, qv16, model.head_w, tq=128, tk=128))
    head_ref = ref_fused_head(mk16, qk16, mv16, qv16, model.head_w)
    np.testing.assert_allclose(np.asarray(head), np.asarray(head_ref),
                               rtol=2e-2, atol=2e-2)   # bf16 MXU operands

    # --- non-multiple-of-128 spatial size exercises the padding / masking path ---
    H2, W2 = 8, 30                                      # HW=240 -> padded to 256
    mk_p = jax.random.normal(jax.random.PRNGKey(3), (B, CK, T, H2, W2), jnp.float32)
    qk_p = jax.random.normal(jax.random.PRNGKey(4), (B, CK, H2, W2), jnp.float32)
    mv_p = jax.random.normal(jax.random.PRNGKey(5), (B, CV, T, H2, W2), jnp.float32)
    qv_p = jax.random.normal(jax.random.PRNGKey(6), (B, CV, H2, W2), jnp.float32)
    head_p = jax.block_until_ready(
        fused_memory_read_head(mk_p, qk_p, mv_p, qv_p, model.head_w))
    head_p_ref = ref_fused_head(mk_p, qk_p, mv_p, qv_p, model.head_w)
    np.testing.assert_allclose(np.asarray(head_p), np.asarray(head_p_ref),
                               rtol=2e-2, atol=2e-2)

    # --- sigmoid + aggregate kernel ---
    sie_logits = jax.random.normal(jax.random.PRNGKey(1),
                                   (B, 1, 4 * H, 4 * W), jnp.float32)
    ag = jax.block_until_ready(aggregate_sigmoid(sie_logits))
    np.testing.assert_allclose(
        np.asarray(ag), np.asarray(ref_aggregate(jax.nn.sigmoid(sie_logits))),
        rtol=1e-4, atol=1e-4)

    # --- soft aggregation kernel ---
    ps_test = jax.nn.sigmoid(
        jax.random.normal(jax.random.PRNGKey(2), (B, 4 * H, 4 * W), jnp.float32))
    sa = jax.block_until_ready(soft_aggregation(ps_test, MAX_OBJ))
    np.testing.assert_allclose(
        np.asarray(sa), np.asarray(ref_soft_aggregation(ps_test, MAX_OBJ)),
        rtol=1e-4, atol=1e-4)

    # --- full segment path ---
    outs = jax.block_until_ready(model.segment(qk16, qv16, qf8, qf4, mk16, mv16))
    logits, prob_full, boundary, logits_SIE, prob_SIE = outs
    assert logits.shape == (1, MAX_OBJ + 1, 4 * H, 4 * W)
    assert prob_full.shape == (1, MAX_OBJ + 1, 4 * H, 4 * W)
    assert boundary.shape == (B, 1, 4 * H, 4 * W)
    assert logits_SIE.shape == (B, 2, 4 * H, 4 * W)
    assert prob_SIE.shape == (B, 1, 4 * H, 4 * W)
    assert np.isfinite(np.asarray(prob_full)).all()

    print("KERNEL_OK")
</pallas_src>

<mosaic_0001>
module attributes {stable_mosaic.version = 11 : i64} {
  func.func @_fused_read_head_kernel(%arg0: i32, %arg1: i32, %arg2: i32, %arg3: memref<1x19x128xbf16, #tpu.memory_space<vmem>>, %arg4: memref<1x19x128xbf16, #tpu.memory_space<vmem>>, %arg5: memref<1x5x128xbf16, #tpu.memory_space<vmem>>, %arg6: memref<1x4x128xf32, #tpu.memory_space<vmem>>, %arg7: memref<1x4x128xf32, #tpu.memory_space<vmem>>, %arg8: memref<5x128xf32, #tpu.memory_space<vmem>>) attributes {dimension_semantics = [#tpu.dimension_semantics<parallel>, #tpu.dimension_semantics<parallel>, #tpu.dimension_semantics<arbitrary>], iteration_bounds = array<i64: 1, 2, 4>, scalar_prefetch = 0 : i64, scratch_operands = 1 : i64, tpu.core_type = #tpu.core_type<tc>, window_params = [{transform_indices = @transform_0, window_bounds = array<i64: 1, 19, 128>}, {transform_indices = @transform_1, window_bounds = array<i64: 1, 19, 128>}, {transform_indices = @transform_2, window_bounds = array<i64: 1, 5, 128>}, {transform_indices = @transform_3, window_bounds = array<i64: 1, 4, 128>}, {transform_indices = @transform_4, window_bounds = array<i64: 1, 4, 128>}]} {
    %c0_i32 = arith.constant 0 : i32
    %0 = arith.cmpi eq, %arg2, %c0_i32 : i32
    %1 = arith.extui %0 : i1 to i32
    %c0_i32_0 = arith.constant 0 : i32
    %2 = arith.cmpi ne, %1, %c0_i32_0 : i32
    scf.if %2 {
      %cst_15 = arith.constant 0.000000e+00 : f32
      %19 = vector.broadcast %cst_15 : f32 to vector<5x128xf32>
      %c0_16 = arith.constant 0 : index
      %c0_17 = arith.constant 0 : index
      %20 = vector.load %arg8[%c0_16, %c0_17] : memref<5x128xf32, #tpu.memory_space<vmem>>, vector<5x128xf32>
      tpu.vector_store %arg8[%c0_16, %c0_17], %19 {strides = array<i32>} : memref<5x128xf32, #tpu.memory_space<vmem>>, vector<5x128xf32>,
    } else {
    }
    %c0 = arith.constant 0 : index
    %c0_1 = arith.constant 0 : index
    %c0_2 = arith.constant 0 : index
    %3 = vector.load %arg3[%c0, %c0_1, %c0_2] : memref<1x19x128xbf16, #tpu.memory_space<vmem>>, vector<1x19x128xbf16>
    %4 = vector.shape_cast %3 : vector<1x19x128xbf16> to vector<19x128xbf16>
    %c0_3 = arith.constant 0 : index
    %c0_4 = arith.constant 0 : index
    %c0_5 = arith.constant 0 : index
    %5 = vector.load %arg4[%c0_3, %c0_4, %c0_5] : memref<1x19x128xbf16, #tpu.memory_space<vmem>>, vector<1x19x128xbf16>
    %6 = vector.shape_cast %5 : vector<1x19x128xbf16> to vector<19x128xbf16>
    %cst = arith.constant dense<0.000000e+00> : vector<128x128xf32>
    %7 = tpu.matmul %4, %6, %cst {dimension_numbers = #tpu.dot_dimension_numbers<[0], [0], [1], [1], [0, 1, 1, 1], [], []>} : vector<19x128xbf16>, vector<19x128xbf16>, vector<128x128xf32> -> vector<128x128xf32>
    %8 = math.exp %7 : vector<128x128xf32>
    %9 = arith.truncf %8 : vector<128x128xf32> to vector<128x128xbf16>
    %c0_6 = arith.constant 0 : index
    %c0_7 = arith.constant 0 : index
    %c0_8 = arith.constant 0 : index
    %10 = vector.load %arg5[%c0_6, %c0_7, %c0_8] : memref<1x5x128xbf16, #tpu.memory_space<vmem>>, vector<1x5x128xbf16>
    %11 = vector.shape_cast %10 : vector<1x5x128xbf16> to vector<5x128xbf16>
    %c0_9 = arith.constant 0 : index
    %c0_10 = arith.constant 0 : index
    %12 = vector.load %arg8[%c0_9, %c0_10] : memref<5x128xf32, #tpu.memory_space<vmem>>, vector<5x128xf32>
    %cst_11 = arith.constant dense<0.000000e+00> : vector<5x128xf32>
    %13 = tpu.matmul %11, %9, %cst_11 {dimension_numbers = #tpu.dot_dimension_numbers<[1], [0], [0], [1], [0, 0, 1, 1], [], []>} : vector<5x128xbf16>, vector<128x128xbf16>, vector<5x128xf32> -> vector<5x128xf32>
    %14 = arith.addf %12, %13 : vector<5x128xf32>
    %c0_12 = arith.constant 0 : index
    %c0_13 = arith.constant 0 : index
    %15 = vector.load %arg8[%c0_12, %c0_13] : memref<5x128xf32, #tpu.memory_space<vmem>>, vector<5x128xf32>
    tpu.vector_store %arg8[%c0_12, %c0_13], %14 {strides = array<i32>} : memref<5x128xf32, #tpu.memory_space<vmem>>, vector<5x128xf32>,
    %c3_i32 = arith.constant 3 : i32
    %16 = arith.cmpi eq, %arg2, %c3_i32 : i32
    %17 = arith.extui %16 : i1 to i32
    %c0_i32_14 = arith.constant 0 : i32
    %18 = arith.cmpi ne, %17, %c0_i32_14 : i32
    scf.if %18 {
      %c4 = arith.constant 4 : index
      %c0_15 = arith.constant 0 : index
      %19 = vector.load %arg8[%c4, %c0_15] : memref<5x128xf32, #tpu.memory_space<vmem>>, vector<1x128xf32>
      %cst_16 = arith.constant 1.000000e-30 : f32
      %20 = vector.broadcast %cst_16 : f32 to vector<1x128xf32>
      %21 = arith.maximumf %19, %20 : vector<1x128xf32>
      %22 = tpu.reciprocal %21 {approx = true} : vector<1x128xf32> -> vector<1x128xf32>
      %c0_17 = arith.constant 0 : index
      %c0_18 = arith.constant 0 : index
      %23 = vector.load %arg8[%c0_17, %c0_18] : memref<5x128xf32, #tpu.memory_space<vmem>>, vector<4x128xf32>
      %24 = vector.broadcast %22 : vector<1x128xf32> to vector<4x128xf32>
      %25 = arith.mulf %23, %24 : vector<4x128xf32>
      %c0_19 = arith.constant 0 : index
      %c0_20 = arith.constant 0 : index
      %c0_21 = arith.constant 0 : index
      %26 = vector.load %arg6[%c0_19, %c0_20, %c0_21] : memref<1x4x128xf32, #tpu.memory_space<vmem>>, vector<1x4x128xf32>
      %27 = vector.shape_cast %26 : vector<1x4x128xf32> to vector<4x128xf32>
      %28 = arith.addf %25, %27 : vector<4x128xf32>
      %c0_22 = arith.constant 0 : index
      %c0_23 = arith.constant 0 : index
      %c0_24 = arith.constant 0 : index
      %29 = vector.load %arg7[%c0_22, %c0_23, %c0_24] : memref<1x4x128xf32, #tpu.memory_space<vmem>>, vector<1x4x128xf32>
      %30 = vector.shape_cast %29 : vector<1x4x128xf32> to vector<4x128xf32>
      %31 = vector.shape_cast %28 : vector<4x128xf32> to vector<1x4x128xf32>
      tpu.vector_store %arg7[%c0_22, %c0_23, %c0_24], %31 {strides = array<i32>} : memref<1x4x128xf32, #tpu.memory_space<vmem>>, vector<1x4x128xf32>,
    } else {
    }
    return
  }
  func.func @transform_0(%arg0: i32, %arg1: i32, %arg2: i32) -> (i32, i32, i32) {
    %c0_i32 = arith.constant 0 : i32
    %c0_i32_0 = arith.constant 0 : i32
    return %arg0, %c0_i32, %arg2 : i32, i32, i32
  }
  func.func @transform_1(%arg0: i32, %arg1: i32, %arg2: i32) -> (i32, i32, i32) {
    %c0_i32 = arith.constant 0 : i32
    %c0_i32_0 = arith.constant 0 : i32
    return %arg0, %c0_i32, %arg1 : i32, i32, i32
  }
  func.func @transform_2(%arg0: i32, %arg1: i32, %arg2: i32) -> (i32, i32, i32) {
    %c0_i32 = arith.constant 0 : i32
    %c0_i32_0 = arith.constant 0 : i32
    return %arg0, %c0_i32, %arg2 : i32, i32, i32
  }
  func.func @transform_3(%arg0: i32, %arg1: i32, %arg2: i32) -> (i32, i32, i32) {
    %c0_i32 = arith.constant 0 : i32
    %c0_i32_0 = arith.constant 0 : i32
    return %arg0, %c0_i32, %arg1 : i32, i32, i32
  }
  func.func @transform_4(%arg0: i32, %arg1: i32, %arg2: i32) -> (i32, i32, i32) {
    %c0_i32 = arith.constant 0 : i32
    %c0_i32_0 = arith.constant 0 : i32
    return %arg0, %c0_i32, %arg1 : i32, i32, i32
  }
}

</mosaic_0001>

<llo_original>
// kernel: tpu_custom_call.1
$region0: #{tpu_custom_call.1}
  #allocation0 [shape = 'u32[]', space=smem, size = 0x4, offset = 0x4, fixed_abs, tag = 'smem constant byte address 0x4 - core index']
  #allocation1 [shape = 'u32[144,128]{1,0:T(1,128)}', space=vmem, size = 0x12000, scoped, tag = 'internal scratch']
  #allocation2 [shape = 'f32[5,128]{1,0:T(8,128)}', space=vmem, size = 0x1000, scoped, tag = 'scratch operand']
  %s0 = inlined_call_operand.hbm [shape: bf16[1,19,512], index: 0, kind: input, shape index: {}]
  %s1 = inlined_call_operand.hbm [shape: bf16[1,19,256], index: 1, kind: input, shape index: {}]
  %s2 = inlined_call_operand.hbm [shape: bf16[1,5,512], index: 2, kind: input, shape index: {}]
  %s3 = inlined_call_operand.vmem [shape: f32[1,4,256], index: 3, kind: input, shape index: {}]
  %s4 = inlined_call_operand.hbm [shape: f32[1,4,256], index: 4, kind: output, shape index: {}]
  %s5 = sld [smem:[#allocation0]]
  $region69: #{tpu_custom_call.1} parent=0
    _
  %s7 = ssub.s32 1, %s5
  %s8 = scalar_select 0, %s7, %s5
  $region1: #{tpu_custom_call.1} parent=0
    #allocation3 [shape = 'u8[12288]{0}', space=vmem, size = 0x3000, scoped, tag = 'input window, operand 0']
    #allocation4 [shape = 's32[2]{0}', space=sflag, size = 0x8, scoped, tag = 'scoped memory for tpu_custom_call.1']
    #allocation5 [shape = 's32[2]{0}', space=sflag, size = 0x8, scoped, tag = 'scoped memory for tpu_custom_call.1']
    #allocation6 [shape = 'u8[12288]{0}', space=vmem, size = 0x3000, scoped, tag = 'input window, operand 1']
    #allocation7 [shape = 's32[2]{0}', space=sflag, size = 0x8, scoped, tag = 'scoped memory for tpu_custom_call.1']
    #allocation8 [shape = 'u8[4096]{0}', space=vmem, size = 0x1000, scoped, tag = 'input window, operand 2']
    #allocation9 [shape = 'u8[4096]{0}', space=vmem, size = 0x1000, scoped, tag = 'output window, operand 0']
    %9 = vsyncpa [#allocation4], 0
    %s10 = scalar_lea.sflag [#allocation4], 1
    %11 = vsyncpa %s10, 0
    %12 = vsyncpa [#allocation7], 0
    %s13 = scalar_lea.sflag [#allocation7], 1
    %14 = vsyncpa %s13, 0
    %15 = vsyncpa [#allocation5], 0
    %s16 = scalar_lea.sflag [#allocation5], 1
    %17 = vsyncpa %s16, 0
    loop: start=0, step=1, limit=10
    $region2: #{tpu_custom_call.1} parent=1 // loop_pre_header
      _
    $region3: #{tpu_custom_call.1} parent=1 // loop_header
      %s19 = sphi 0, %s23
      %p20 = scmp.ge.s32.totalorder %s19, 10
      %s26 = sphi 0, %s45
      %s27 = sphi 0, %s41
      %s28 = sphi 0, %s37
      %s29 = sphi 0, %s26
      %s30 = sphi 0, %s27
      %s31 = sphi 0, %s28
      %s32 = sphi 0, %s29
      %s33 = sphi 0, %s30
      %s34 = sphi 0, %s31
      %s50 = sphi 0, %s52
      %s53 = sphi 0, %s50
      %s54 = sphi 0, %s53
      %s70 = sphi 0, %s54
      %s78 = sphi 0, %s80
      %s81 = sphi 0, %s78
      %s82 = sphi 0, %s81
      %s98 = sphi 0, %s82
      %s106 = sphi 0, %s108
      %s109 = sphi 0, %s106
      %s110 = sphi 0, %s109
      %s126 = sphi 0, %s110
      %s134 = sphi 0, %s136
      %s137 = sphi 0, %s134
      %s138 = sphi 0, %s137
      %s154 = sphi 0, %s138
      %s162 = sphi 0, %s164
      %s165 = sphi 0, %s162
      %s166 = sphi 0, %s165
      %s182 = sphi 0, %s166
    $region4: #{tpu_custom_call.1} parent=1 // loop_header_branch
      %22 = sbr.rel (%p20) target = $region8
    $region5: #{tpu_custom_call.1} parent=1 // loop_body
      %s24 = ssub.s32 %s19, 1
      %s25 = ssub.s32 %s19, 2
      %s35 = sadd.s32 1, %s28
      %p36 = scmp.ge.s32.totalorder %s35, 4
      %s37 = scalar_select %p36, 0, %s35
      %s38 = sadd.s32 1, %s27
      %s39 = scalar_select %p36, %s38, %s27
      %p40 = scmp.ge.s32.totalorder %s39, 2
      %s41 = scalar_select %p40, 0, %s39
      %s42 = sadd.s32 1, %s26
      %s43 = scalar_select %p40, %s42, %s26
      %p44 = scmp.ge.s32.totalorder %s43, 1
      %s45 = scalar_select %p44, 0, %s43
      %s46 = ssub.s32 %s26, %s45
      %s47 = ssub.s32 %s28, %s37
      %s48 = sor.u32 %s46, %s47
      %p49 = scmp.eq.s32.totalorder %s48, 0
      %s51 = sadd.s32 %s50, 1
      %s52 = scalar_select %p49, %s50, %s51
      %p55 = pneg %p49
      %p56 = scmp.eq.s32.totalorder %s19, 7
      %p57 = por %p55, %p56
      %p58 = scmp.ne.s32.totalorder %s50, %s53
      %p59 = scmp.eq.s32.totalorder %s19, 0
      %p60 = por %p58, %p59
      %p61 = scmp.ne.s32.totalorder %s50, %s53
      %p62 = scmp.eq.s32.totalorder %s24, 7
      %p63 = por %p61, %p62
      %p64 = scmp.ne.s32.totalorder %s53, %s54
      %p65 = scmp.eq.s32.totalorder %s24, 0
      %p66 = por %p64, %p65
      %p67 = scmp.ne.s32.totalorder %s53, %s54
      %p68 = scmp.eq.s32.totalorder %s25, 7
      %p69 = por %p67, %p68
      %p71 = scmp.ne.s32.totalorder %s54, %s70
      %p72 = scmp.eq.s32.totalorder %s25, 0
      %p73 = por %p71, %p72
      %s74 = ssub.s32 %s26, %s45
      %s75 = ssub.s32 %s27, %s41
      %s76 = sor.u32 %s74, %s75
      %p77 = scmp.eq.s32.totalorder %s76, 0
      %s79 = sadd.s32 %s78, 1
      %s80 = scalar_select %p77, %s78, %s79
      %p83 = pneg %p77
      %p84 = scmp.eq.s32.totalorder %s19, 7
      %p85 = por %p83, %p84
      %p86 = scmp.ne.s32.totalorder %s78, %s81
      %p87 = scmp.eq.s32.totalorder %s19, 0
      %p88 = por %p86, %p87
      %p89 = scmp.ne.s32.totalorder %s78, %s81
      %p90 = scmp.eq.s32.totalorder %s24, 7
      %p91 = por %p89, %p90
      %p92 = scmp.ne.s32.totalorder %s81, %s82
      %p93 = scmp.eq.s32.totalorder %s24, 0
      %p94 = por %p92, %p93
      %p95 = scmp.ne.s32.totalorder %s81, %s82
      %p96 = scmp.eq.s32.totalorder %s25, 7
      %p97 = por %p95, %p96
      %p99 = scmp.ne.s32.totalorder %s82, %s98
      %p100 = scmp.eq.s32.totalorder %s25, 0
      %p101 = por %p99, %p100
      %s102 = ssub.s32 %s26, %s45
      %s103 = ssub.s32 %s28, %s37
      %s104 = sor.u32 %s102, %s103
      %p105 = scmp.eq.s32.totalorder %s104, 0
      %s107 = sadd.s32 %s106, 1
      %s108 = scalar_select %p105, %s106, %s107
      %p111 = pneg %p105
      %p112 = scmp.eq.s32.totalorder %s19, 7
      %p113 = por %p111, %p112
      %p114 = scmp.ne.s32.totalorder %s106, %s109
      %p115 = scmp.eq.s32.totalorder %s19, 0
      %p116 = por %p114, %p115
      %p117 = scmp.ne.s32.totalorder %s106, %s109
      %p118 = scmp.eq.s32.totalorder %s24, 7
      %p119 = por %p117, %p118
      %p120 = scmp.ne.s32.totalorder %s109, %s110
      %p121 = scmp.eq.s32.totalorder %s24, 0
      %p122 = por %p120, %p121
      %p123 = scmp.ne.s32.totalorder %s109, %s110
      %p124 = scmp.eq.s32.totalorder %s25, 7
      %p125 = por %p123, %p124
      %p127 = scmp.ne.s32.totalorder %s110, %s126
      %p128 = scmp.eq.s32.totalorder %s25, 0
      %p129 = por %p127, %p128
      %s130 = ssub.s32 %s26, %s45
      %s131 = ssub.s32 %s27, %s41
      %s132 = sor.u32 %s130, %s131
      %p133 = scmp.eq.s32.totalorder %s132, 0
      %s135 = sadd.s32 %s134, 1
      %s136 = scalar_select %p133, %s134, %s135
      %p139 = pneg %p133
      %p140 = scmp.eq.s32.totalorder %s19, 7
      %p141 = por %p139, %p140
      %p142 = scmp.ne.s32.totalorder %s134, %s137
      %p143 = scmp.eq.s32.totalorder %s19, 0
      %p144 = por %p142, %p143
      %p145 = scmp.ne.s32.totalorder %s134, %s137
      %p146 = scmp.eq.s32.totalorder %s24, 7
      %p147 = por %p145, %p146
      %p148 = scmp.ne.s32.totalorder %s137, %s138
      %p149 = scmp.eq.s32.totalorder %s24, 0
      %p150 = por %p148, %p149
      %p151 = scmp.ne.s32.totalorder %s137, %s138
      %p152 = scmp.eq.s32.totalorder %s25, 7
      %p153 = por %p151, %p152
      %p155 = scmp.ne.s32.totalorder %s138, %s154
      %p156 = scmp.eq.s32.totalorder %s25, 0
      %p157 = por %p155, %p156
      %s158 = ssub.s32 %s26, %s45
      %s159 = ssub.s32 %s27, %s41
      %s160 = sor.u32 %s158, %s159
      %p161 = scmp.eq.s32.totalorder %s160, 0
      %s163 = sadd.s32 %s162, 1
      %s164 = scalar_select %p161, %s162, %s163
      %p167 = pneg %p161
      %p168 = scmp.eq.s32.totalorder %s19, 7
      %p169 = por %p167, %p168
      %p170 = scmp.ne.s32.totalorder %s162, %s165
      %p171 = scmp.eq.s32.totalorder %s19, 0
      %p172 = por %p170, %p171
      %p173 = scmp.ne.s32.totalorder %s162, %s165
      %p174 = scmp.eq.s32.totalorder %s24, 7
      %p175 = por %p173, %p174
      %p176 = scmp.ne.s32.totalorder %s165, %s166
      %p177 = scmp.eq.s32.totalorder %s24, 0
      %p178 = por %p176, %p177
      %p179 = scmp.ne.s32.totalorder %s165, %s166
      %p180 = scmp.eq.s32.totalorder %s25, 7
      %p181 = por %p179, %p180
      %p183 = scmp.ne.s32.totalorder %s166, %s182
      %p184 = scmp.eq.s32.totalorder %s25, 0
      %p185 = por %p183, %p184
      %p186 = scmp.le.s32.totalorder 1, %s19
      %p187 = scmp.lt.s32.totalorder %s19, 9
      %p188 = pnand %p186, %p187
      %p189 = pneg %p188
      // Predicated region
      $region9: #{tpu_custom_call.1} parent=5 // pred_check
        _
      $region10: #{tpu_custom_call.1} parent=5 // pred_check_branch
        %191 = sbr.rel (%p188) target = $region12
      $region11: #{tpu_custom_call.1} parent=5 // pred_region
        %s192 = ssub.s32 %s19, 1
      $region12: #{tpu_custom_call.1} parent=5 // pred_fallthru
        _
      %p193 = scmp.lt.s32.totalorder %s19, 8
      // Predicated region
      $region13: #{tpu_custom_call.1} parent=5 // pred_check
        %p194 = pneg %p193
      $region14: #{tpu_custom_call.1} parent=5 // pred_check_branch
        %196 = sbr.rel (%p194) target = $region16
      $region15: #{tpu_custom_call.1} parent=5 // pred_region
        // Predicated region
        $region17: #{tpu_custom_call.1} parent=15 // pred_check
          %p197 = pneg %p60
        $region18: #{tpu_custom_call.1} parent=15 // pred_check_branch
          %199 = sbr.rel (%p197) target = $region20
        $region19: #{tpu_custom_call.1} parent=15 // pred_region
          %s200 = sand.u32 %s50, 1
          %s201 = scalar_lea.sflag [#allocation4], %s200
          %s202 = sand.u32 %s50, 1
          %s203 = smul.addr %s202, 12
          %s204 = scalar_lea.vmem [#allocation3], %s203
          %s206 = ssub.s32 192, 192
          %207 = vsyncadd %s201, %s206
          %s208 = smul.addr %s26, 12
          %s209 = sadd.s32 %s28, %s208
          %s210 = smul.addr %s209, 64
          %s211 = scalar_lea.hbm %s0, %s210
          %s212 = sshll.u32 %s204, 4
          %s213 = int_to_ptr.vmem [resolvable:$true] %s212
          %218 = dma.hbm_to_vmem [thread:$0]  %s211, 192, %s213, %s201, 256, 64, 4
        $region20: #{tpu_custom_call.1} parent=15 // pred_fallthru
          _
        // Predicated region
        $region21: #{tpu_custom_call.1} parent=15 // pred_check
          %p219 = pneg %p88
        $region22: #{tpu_custom_call.1} parent=15 // pred_check_branch
          %221 = sbr.rel (%p219) target = $region24
        $region23: #{tpu_custom_call.1} parent=15 // pred_region
          %s222 = sand.u32 %s19, 1
          %s223 = scalar_lea.sflag [#allocation7], %s222
          %s224 = sand.u32 %s78, 1
          %s225 = smul.addr %s224, 12
          %s226 = scalar_lea.vmem [#allocation6], %s225
          %s228 = ssub.s32 192, 192
          %229 = vsyncadd %s223, %s228
          %s230 = smul.addr %s26, 6
          %s231 = sadd.s32 %s27, %s230
          %s232 = smul.addr %s231, 64
          %s233 = scalar_lea.hbm %s1, %s232
          %s234 = sshll.u32 %s226, 4
          %s235 = int_to_ptr.vmem [resolvable:$true] %s234
          %240 = dma.hbm_to_vmem [thread:$0]  %s233, 192, %s235, %s223, 128, 64, 4
        $region24: #{tpu_custom_call.1} parent=15 // pred_fallthru
          _
        // Predicated region
        $region25: #{tpu_custom_call.1} parent=15 // pred_check
          %p241 = pneg %p116
        $region26: #{tpu_custom_call.1} parent=15 // pred_check_branch
          %243 = sbr.rel (%p241) target = $region28
        $region27: #{tpu_custom_call.1} parent=15 // pred_region
          %s244 = sand.u32 %s19, 1
          %s245 = scalar_lea.sflag [#allocation7], %s244
          %s246 = sand.u32 %s106, 1
          %s247 = smul.addr %s246, 4
          %s248 = scalar_lea.vmem [#allocation8], %s247
          %s250 = ssub.s32 64, 64
          %251 = vsyncadd %s245, %s250
          %s252 = smul.addr %s26, 4
          %s253 = sadd.s32 %s28, %s252
          %s254 = smul.addr %s253, 64
          %s255 = scalar_lea.hbm %s2, %s254
          %s257 = sshll.u32 %s248, 4
          %s258 = int_to_ptr.vmem [resolvable:$true] %s257
          %260 = dma.hbm_to_vmem [thread:$0]  %s255, 64, %s258, %s245
        $region28: #{tpu_custom_call.1} parent=15 // pred_fallthru
          _
        // Predicated region
        $region29: #{tpu_custom_call.1} parent=15 // pred_check
          %p261 = pneg %p144
        $region30: #{tpu_custom_call.1} parent=15 // pred_check_branch
          %263 = sbr.rel (%p261) target = $region32
        $region31: #{tpu_custom_call.1} parent=15 // pred_region
          %p264 = scmp.lt.s32.totalorder %s26, 0
          %s265 = scalar_select %p264, %s26, 0
          %p266 = scmp.lt.s32.totalorder %s27, 1
          %s267 = scalar_select %p266, %s27, 1
          %s268 = smul.addr %s265, 2
          %s269 = sadd.s32 %s267, %s268
          %s270 = smul.addr %s269, 4
          %s271 = scalar_lea.vmem %s3, %s270
        $region32: #{tpu_custom_call.1} parent=15 // pred_fallthru
          _
      $region16: #{tpu_custom_call.1} parent=5 // pred_fallthru
        _
      %p272 = scmp.le.s32.totalorder 1, %s19
      %p273 = scmp.lt.s32.totalorder %s19, 9
      %p274 = pnand %p272, %p273
      %p275 = pneg %p274
      // Predicated region
      $region33: #{tpu_custom_call.1} parent=5 // pred_check
        _
      $region34: #{tpu_custom_call.1} parent=5 // pred_check_branch
        %277 = sbr.rel (%p274) target = $region36
      $region35: #{tpu_custom_call.1} parent=5 // pred_region
        %s278 = ssub.s32 %s19, 1
        %s279 = sand.u32 %s53, 1
        %s280 = scalar_lea.sflag [#allocation4], %s279
        %s281 = sand.u32 %s53, 1
        %s282 = smul.addr %s281, 12
        %s283 = scalar_lea.vmem [#allocation3], %s282
        // Predicated region
        $region37: #{tpu_custom_call.1} parent=35 // pred_check
          %p284 = pneg %p66
        $region38: #{tpu_custom_call.1} parent=35 // pred_check_branch
          %286 = sbr.rel (%p284) target = $region40
        $region39: #{tpu_custom_call.1} parent=35 // pred_region
          %287 = dma.done %s280, 192
        $region40: #{tpu_custom_call.1} parent=35 // pred_fallthru
          _
        %s288 = sand.u32 %s24, 1
        %s289 = scalar_lea.sflag [#allocation7], %s288
        %s290 = sand.u32 %s81, 1
        %s291 = smul.addr %s290, 12
        %s292 = scalar_lea.vmem [#allocation6], %s291
        // Predicated region
        $region41: #{tpu_custom_call.1} parent=35 // pred_check
          %p293 = pneg %p94
        $region42: #{tpu_custom_call.1} parent=35 // pred_check_branch
          %295 = sbr.rel (%p293) target = $region44
        $region43: #{tpu_custom_call.1} parent=35 // pred_region
          %296 = dma.done %s289, 192
        $region44: #{tpu_custom_call.1} parent=35 // pred_fallthru
          _
        %s297 = sand.u32 %s24, 1
        %s298 = scalar_lea.sflag [#allocation7], %s297
        %s299 = sand.u32 %s109, 1
        %s300 = smul.addr %s299, 4
        %s301 = scalar_lea.vmem [#allocation8], %s300
        // Predicated region
        $region45: #{tpu_custom_call.1} parent=35 // pred_check
          %p302 = pneg %p122
        $region46: #{tpu_custom_call.1} parent=35 // pred_check_branch
          %304 = sbr.rel (%p302) target = $region48
        $region47: #{tpu_custom_call.1} parent=35 // pred_region
          %305 = dma.done %s298, 64
        $region48: #{tpu_custom_call.1} parent=35 // pred_fallthru
          _
        %s306 = sand.u32 %s53, 1
        %s307 = scalar_lea.sflag [#allocation4], %s306
        %s308 = sand.u32 %s53, 1
        %s309 = smul.addr %s308, 12
        %s310 = scalar_lea.vmem [#allocation3], %s309
        %p311 = pneg %p66
        %p312 = pneg %p63
        %s313 = sand.u32 %s24, 1
        %s314 = scalar_lea.sflag [#allocation7], %s313
        %s315 = sand.u32 %s81, 1
        %s316 = smul.addr %s315, 12
        %s317 = scalar_lea.vmem [#allocation6], %s316
        %p318 = pneg %p94
        %p319 = pneg %p91
        %s320 = sand.u32 %s24, 1
        %s321 = scalar_lea.sflag [#allocation7], %s320
        %s322 = sand.u32 %s109, 1
        %s323 = smul.addr %s322, 4
        %s324 = scalar_lea.vmem [#allocation8], %s323
        %p325 = pneg %p122
        %p326 = pneg %p119
        %p327 = scmp.lt.s32.totalorder %s29, 0
        %s328 = scalar_select %p327, %s29, 0
        %p329 = scmp.lt.s32.totalorder %s30, 1
        %s330 = scalar_select %p329, %s30, 1
        %s331 = smul.addr %s328, 2
        %s332 = sadd.s32 %s330, %s331
        %s333 = smul.addr %s332, 4
        %s334 = scalar_lea.vmem %s3, %s333
        %p335 = pneg %p150
        %p336 = pneg %p147
        %p337 = pneg %p178
        %p338 = pneg %p175
        %s339 = sand.u32 %s165, 1
        %s340 = scalar_lea.sflag [#allocation5], %s339
        %s341 = sand.u32 %s165, 1
        %s342 = smul.addr %s341, 4
        %s343 = scalar_lea.vmem [#allocation9], %s342
        %p344 = scmp.lt.s32.totalorder %s29, 0
        %s345 = scalar_select %p344, %s29, 0
        %p346 = scmp.lt.s32.totalorder %s30, 1
        %s347 = scalar_select %p346, %s30, 1
        %s348 = smul.addr %s345, 2
        %s349 = sadd.s32 %s347, %s348
        %s350 = smul.addr %s349, 4
        %s351 = scalar_lea.vmem %s3, %s350
        %p353 = scmp.eq.s32.totalorder %s31, 0
        // Predicated region
        $region49: #{tpu_custom_call.1} parent=35 // pred_check
          %p354 = pneg %p353
        $region50: #{tpu_custom_call.1} parent=35 // pred_check_branch
          %356 = sbr.rel (%p354) target = $region52
        $region51: #{tpu_custom_call.1} parent=35 // pred_region
          %357 = vst [vmem:[#allocation2] sm:$0x1f] 0.0
        $region52: #{tpu_custom_call.1} parent=35 // pred_fallthru
          _
        %v358 = vld [vmem:[%s283] sm:$0xf]
        %v359 = vld [vmem:[%s283 + $0x4] sm:$0xf]
        %v360 = vld [vmem:[%s283 + $0x8] sm:$0x3]
        %v361 = vld [vmem:[%s292] sm:$0xf]
        %v362 = vld [vmem:[%s292 + $0x4] sm:$0xf]
        %v363 = vld [vmem:[%s292 + $0x8] sm:$0x3]
        %v367 = vunpack.c.l.b16 %v358
        %v368 = vunpack.c.l.b16 %v359
        %v369 = vunpack.c.l.b16 %v360
        %v370 = vpack.c.b16 %v368, %v367
        %v371 = vpack.c.b16 %v369, %v369
        %374 = vxpose.xlu0.c.b16.start [1/8] %v370, 128
        %375 = vxpose.xlu0.c.b16.cont [2/8] %v371, 128
        %376 = vxpose.xlu0.c.b16.cont [3/8] 0, 128
        %377 = vxpose.xlu0.c.b16.cont [4/8] 0, 128
        %378 = vxpose.xlu0.c.b16.cont [5/8] 0, 128
        %379 = vxpose.xlu0.c.b16.cont [6/8] 0, 128
        %380 = vxpose.xlu0.c.b16.cont [7/8] 0, 128
        %381 = vxpose.xlu0.c.b16.end [8/8] 0, 128
        %v382 = vpop.trf.xlu0
        %v383 = vpop.trf.xlu0
        %v384 = vpop.trf.xlu0
        %v385 = vpop.trf.xlu0
        %v386 = vpop.trf.xlu0
        %v387 = vpop.trf.xlu0
        %v388 = vpop.trf.xlu0
        %v389 = vpop.trf.xlu0
        %v393 = vunpack.c.l.b16 %v361
        %v394 = vunpack.c.l.b16 %v362
        %v395 = vunpack.c.l.b16 %v363
        %v396 = vpack.c.b16 %v394, %v393
        %v397 = vpack.c.b16 %v395, %v395
        %vm399 = vcmask 154624
        %v401 = vsel %vm399, %v382, 0
        %v404 = vsel %vm399, %v383, 0
        %v407 = vsel %vm399, %v384, 0
        %v410 = vsel %vm399, %v385, 0
        %v413 = vsel %vm399, %v386, 0
        %v416 = vsel %vm399, %v387, 0
        %v419 = vsel %vm399, %v388, 0
        %v422 = vsel %vm399, %v389, 0
        %vm424 = vcmask 1040384
        %vm425 = vcmask 1041408
        %v426 = vsel %vm424, 4294967295, 65535
        %v427 = vsel %vm425, %v426, 0
        %v429 = vand.u32 %v397, %v427
        %431 = vmatprep.subr.bf16.mxu0 0
        %432 = vmatpush1.bf16.msra.mxu0 %v396
        %433 = vmatprep.subr.bf16.mxu0 0
        %434 = vmatpush1.bf16.msra.mxu0 %v429
        %435 = vmatprep.subr.bf16.mxu0 0
        %436 = vmatpush1.bf16.msra.mxu0 0
        %437 = vmatprep.subr.bf16.mxu0 0
        %438 = vmatpush1.bf16.msra.mxu0 0
        %439 = vmatprep.subr.bf16.mxu0 0
        %440 = vmatpush1.bf16.msra.mxu0 0
        %441 = vmatprep.subr.bf16.mxu0 0
        %442 = vmatpush1.bf16.msra.mxu0 0
        %443 = vmatprep.subr.bf16.mxu0 0
        %444 = vmatpush1.bf16.msra.mxu0 0
        %445 = vmatprep.subr.bf16.mxu0 0
        %446 = vmatpush1.bf16.msra.mxu0 0
        %447 = vmatprep.subr.bf16.mxu0 0
        %448 = vmatpush1.bf16.msra.mxu0 0
        %449 = vmatprep.subr.bf16.mxu0 0
        %450 = vmatpush1.bf16.msra.mxu0 0
        %451 = vmatprep.subr.bf16.mxu0 0
        %452 = vmatpush1.bf16.msra.mxu0 0
        %453 = vmatprep.subr.bf16.mxu0 0
        %454 = vmatpush1.bf16.msra.mxu0 0
        %455 = vmatprep.subr.bf16.mxu0 0
        %456 = vmatpush1.bf16.msra.mxu0 0
        %457 = vmatprep.subr.bf16.mxu0 0
        %458 = vmatpush1.bf16.msra.mxu0 0
        %459 = vmatprep.subr.bf16.mxu0 0
        %460 = vmatpush1.bf16.msra.mxu0 0
        %461 = vmatprep.subr.bf16.mxu0 0
        %462 = vmatpush1.bf16.msra.mxu0 0
        %463 = vmatprep.mubr.bf16.mxu0 0
        %464 = vmatmul.mubr.bf16.gmra.mrb[0].mxu0 %v401
        %v465 = vpop.f32.mrb[0].mxu0
        %v466 = vadd.f32 0.0, %v465
        %v467 = vpop.f32.mrb[0].mxu0
        %v468 = vpop.f32.mrb[0].mxu0
        %v469 = vadd.f32 0.0, %v468
        %v470 = vpop.f32.mrb[0].mxu0
        %471 = vmatprep.mubr.bf16.mxu0 0
        %472 = vmatmul.mubr.bf16.gmra.mrb[0].mxu0 %v404
        %v473 = vpop.f32.mrb[0].mxu0
        %v474 = vadd.f32 0.0, %v473
        %v475 = vpop.f32.mrb[0].mxu0
        %v476 = vpop.f32.mrb[0].mxu0
        %v477 = vadd.f32 0.0, %v476
        %v478 = vpop.f32.mrb[0].mxu0
        %479 = vmatprep.mubr.bf16.mxu0 0
        %480 = vmatmul.mubr.bf16.gmra.mrb[0].mxu0 %v407
        %v481 = vpop.f32.mrb[0].mxu0
        %v482 = vadd.f32 0.0, %v481
        %v483 = vpop.f32.mrb[0].mxu0
        %v484 = vpop.f32.mrb[0].mxu0
        %v485 = vadd.f32 0.0, %v484
        %v486 = vpop.f32.mrb[0].mxu0
        %487 = vmatprep.mubr.bf16.mxu0 0
        %488 = vmatmul.mubr.bf16.gmra.mrb[0].mxu0 %v410
        %v489 = vpop.f32.mrb[0].mxu0
        %v490 = vadd.f32 0.0, %v489
        %v491 = vpop.f32.mrb[0].mxu0
        %v492 = vpop.f32.mrb[0].mxu0
        %v493 = vadd.f32 0.0, %v492
        %v494 = vpop.f32.mrb[0].mxu0
        %495 = vmatprep.mubr.bf16.mxu0 0
        %496 = vmatmul.mubr.bf16.gmra.mrb[0].mxu0 %v413
        %v497 = vpop.f32.mrb[0].mxu0
        %v498 = vadd.f32 0.0, %v497
        %v499 = vpop.f32.mrb[0].mxu0
        %v500 = vpop.f32.mrb[0].mxu0
        %v501 = vadd.f32 0.0, %v500
        %v502 = vpop.f32.mrb[0].mxu0
        %503 = vmatprep.mubr.bf16.mxu0 0
        %504 = vmatmul.mubr.bf16.gmra.mrb[0].mxu0 %v416
        %v505 = vpop.f32.mrb[0].mxu0
        %v506 = vadd.f32 0.0, %v505
        %v507 = vpop.f32.mrb[0].mxu0
        %v508 = vpop.f32.mrb[0].mxu0
        %v509 = vadd.f32 0.0, %v508
        %v510 = vpop.f32.mrb[0].mxu0
        %511 = vmatprep.mubr.bf16.mxu0 0
        %512 = vmatmul.mubr.bf16.gmra.mrb[0].mxu0 %v419
        %v513 = vpop.f32.mrb[0].mxu0
        %v514 = vadd.f32 0.0, %v513
        %v515 = vpop.f32.mrb[0].mxu0
        %v516 = vpop.f32.mrb[0].mxu0
        %v517 = vadd.f32 0.0, %v516
        %v518 = vpop.f32.mrb[0].mxu0
        %519 = vmatprep.mubr.bf16.mxu0 0
        %520 = vmatmul.mubr.bf16.gmra.mrb[0].mxu0 %v422
        %v521 = vpop.f32.mrb[0].mxu0
        %v522 = vadd.f32 0.0, %v521
        %v523 = vpop.f32.mrb[0].mxu0
        %v524 = vpop.f32.mrb[0].mxu0
        %v525 = vadd.f32 0.0, %v524
        %v526 = vpop.f32.mrb[0].mxu0
        %527 = vdwg.mxu0
        %v528 = vmul.f32 %v466, 1.442695
        %v529 = vpow.pop %v528
        %v530 = vmul.f32 %v469, 1.442695
        %v531 = vpow.pop %v530
        %v532 = vmul.f32 %v474, 1.442695
        %v533 = vpow.pop %v532
        %v534 = vmul.f32 %v477, 1.442695
        %v535 = vpow.pop %v534
        %v536 = vmul.f32 %v482, 1.442695
        %v537 = vpow.pop %v536
        %v538 = vmul.f32 %v485, 1.442695
        %v539 = vpow.pop %v538
        %v540 = vmul.f32 %v490, 1.442695
        %v541 = vpow.pop %v540
        %v542 = vmul.f32 %v493, 1.442695
        %v543 = vpow.pop %v542
        %v544 = vmul.f32 %v498, 1.442695
        %v545 = vpow.pop %v544
        %v546 = vmul.f32 %v501, 1.442695
        %v547 = vpow.pop %v546
        %v548 = vmul.f32 %v506, 1.442695
        %v549 = vpow.pop %v548
        %v550 = vmul.f32 %v509, 1.442695
        %v551 = vpow.pop %v550
        %v552 = vmul.f32 %v514, 1.442695
        %v553 = vpow.pop %v552
        %v554 = vmul.f32 %v517, 1.442695
        %v555 = vpow.pop %v554
        %v556 = vmul.f32 %v522, 1.442695
        %v557 = vpow.pop %v556
        %v558 = vmul.f32 %v525, 1.442695
        %v559 = vpow.pop %v558
        %v560 = vpack.c.bf16 %v531, %v529
        %v561 = vpack.c.bf16 %v535, %v533
        %v562 = vpack.c.bf16 %v539, %v537
        %v563 = vpack.c.bf16 %v543, %v541
        %v564 = vpack.c.bf16 %v547, %v545
        %v565 = vpack.c.bf16 %v551, %v549
        %v566 = vpack.c.bf16 %v555, %v553
        %v567 = vpack.c.bf16 %v559, %v557
        %v568 = vld [vmem:[%s301] sm:$0x7]
        %v569 = vld [vmem:[#allocation2] sm:$0x1f]
        %570 = vmatprep.subr.bf16.mxu0 0
        %571 = vmatpush1.bf16.msra.mxu0 %v560
        %572 = vmatprep.subr.bf16.mxu0 0
        %573 = vmatpush1.bf16.msra.mxu0 %v561
        %574 = vmatprep.subr.bf16.mxu0 0
        %575 = vmatpush1.bf16.msra.mxu0 %v562
        %576 = vmatprep.subr.bf16.mxu0 0
        %577 = vmatpush1.bf16.msra.mxu0 %v563
        %578 = vmatprep.subr.bf16.mxu0 0
        %579 = vmatpush1.bf16.msra.mxu0 %v564
        %580 = vmatprep.subr.bf16.mxu0 0
        %581 = vmatpush1.bf16.msra.mxu0 %v565
        %582 = vmatprep.subr.bf16.mxu0 0
        %583 = vmatpush1.bf16.msra.mxu0 %v566
        %584 = vmatprep.subr.bf16.mxu0 0
        %585 = vmatpush1.bf16.msra.mxu0 %v567
        %586 = vmatprep.subr.bf16.mxu0 0
        %587 = vmatpush1.bf16.msra.mxu0 0
        %588 = vmatprep.subr.bf16.mxu0 0
        %589 = vmatpush1.bf16.msra.mxu0 0
        %590 = vmatprep.subr.bf16.mxu0 0
        %591 = vmatpush1.bf16.msra.mxu0 0
        %592 = vmatprep.subr.bf16.mxu0 0
        %593 = vmatpush1.bf16.msra.mxu0 0
        %594 = vmatprep.subr.bf16.mxu0 0
        %595 = vmatpush1.bf16.msra.mxu0 0
        %596 = vmatprep.subr.bf16.mxu0 0
        %597 = vmatpush1.bf16.msra.mxu0 0
        %598 = vmatprep.subr.bf16.mxu0 0
        %599 = vmatpush1.bf16.msra.mxu0 0
        %600 = vmatprep.subr.bf16.mxu0 0
        %601 = vmatpush1.bf16.msra.mxu0 0
        %602 = vmatprep.mubr.bf16.mxu0 0
        %603 = vmatmul.mubr.bf16.gmra.mrb[0].mxu0 %v568
        %v604 = vpop.f32.mrb[0].mxu0
        %v605 = vadd.f32 0.0, %v604
        %v606 = vpop.f32.mrb[0].mxu0
        %v607 = vpop.f32.mrb[0].mxu0
        %v608 = vpop.f32.mrb[0].mxu0
        %609 = vdwg.mxu0
        %v610 = vadd.f32 %v569, %v605
        %611 = vst [vmem:[#allocation2] sm:$0x1f] %v610
        %p612 = scmp.eq.s32.totalorder %s31, 3
        // Predicated region
        $region53: #{tpu_custom_call.1} parent=35 // pred_check
          %p613 = pneg %p612
        $region54: #{tpu_custom_call.1} parent=35 // pred_check_branch
          %615 = sbr.rel (%p613) target = $region56
        $region55: #{tpu_custom_call.1} parent=35 // pred_region
          %v616 = vld [vmem:[#allocation2 + $0x4] sm:$0x1]
          %v617 = vmax.f32 %v616, 1e-30
          %v618 = vrcp.pop %v617
          %v619 = vld [vmem:[#allocation2] sm:$0xf]
          %v620 = vlaneseq
          %v621 = vshrl.u32 %v620, 7
          %v622 = vsub.s32 0, %v621
          %v623 = vrot.slane %v618, %v622
          %v624 = vmul.f32 %v619, %v623
          %v625 = vld [vmem:[%s351] sm:$0xf]
          %v626 = vadd.f32 %v624, %v625
          %627 = vst [vmem:[%s343] sm:$0xf] %v626
        $region56: #{tpu_custom_call.1} parent=35 // pred_fallthru
          _
        %s628 = sand.u32 %s165, 1
        %s629 = scalar_lea.sflag [#allocation5], %s628
        %s630 = sand.u32 %s165, 1
        %s631 = smul.addr %s630, 4
        %s632 = scalar_lea.vmem [#allocation9], %s631
        // Predicated region
        $region57: #{tpu_custom_call.1} parent=35 // pred_check
          %p633 = pneg %p175
        $region58: #{tpu_custom_call.1} parent=35 // pred_check_branch
          %635 = sbr.rel (%p633) target = $region60
        $region59: #{tpu_custom_call.1} parent=35 // pred_region
          %s637 = ssub.s32 64, 64
          %638 = vsyncadd %s629, %s637
          %s639 = smul.addr %s29, 2
          %s640 = sadd.s32 %s30, %s639
          %s641 = smul.addr %s640, 64
          %s642 = scalar_lea.hbm %s4, %s641
          %s644 = sshll.u32 %s632, 4
          %s645 = int_to_ptr.vmem [resolvable:$true] %s644
          %647 = dma.vmem_to_hbm [thread:$0]  %s645, 64, %s642, %s629
        $region60: #{tpu_custom_call.1} parent=35 // pred_fallthru
          _
      $region36: #{tpu_custom_call.1} parent=5 // pred_fallthru
        _
      %p648 = scmp.le.s32.totalorder 2, %s19
      // Predicated region
      $region61: #{tpu_custom_call.1} parent=5 // pred_check
        %p649 = pneg %p648
      $region62: #{tpu_custom_call.1} parent=5 // pred_check_branch
        %651 = sbr.rel (%p649) target = $region64
      $region63: #{tpu_custom_call.1} parent=5 // pred_region
        %s652 = ssub.s32 %s19, 2
        // Predicated region
        $region65: #{tpu_custom_call.1} parent=63 // pred_check
          %p653 = pneg %p181
        $region66: #{tpu_custom_call.1} parent=63 // pred_check_branch
          %655 = sbr.rel (%p653) target = $region68
        $region67: #{tpu_custom_call.1} parent=63 // pred_region
          %s656 = sand.u32 %s166, 1
          %s657 = scalar_lea.sflag [#allocation5], %s656
          %s658 = sand.u32 %s166, 1
          %s659 = smul.addr %s658, 4
          %s660 = scalar_lea.vmem [#allocation9], %s659
          %661 = dma.done %s657, 64
        $region68: #{tpu_custom_call.1} parent=63 // pred_fallthru
          _
      $region64: #{tpu_custom_call.1} parent=5 // pred_fallthru
        _
    $region6: #{tpu_custom_call.1} parent=1 // loop_footer
      %s23 = sadd.s32 1, %s19
    $region7: #{tpu_custom_call.1} parent=1 // loop_footer_branch
      %18 = sbr.rel target = $region3
    $region8: #{tpu_custom_call.1} parent=1 // loop_exit
      _
    %662 = vsyncpa [#allocation4], 1
    %s663 = scalar_lea.sflag [#allocation4], 1
    %664 = vsyncpa %s663, 1
    %665 = vsyncpa [#allocation7], 1
    %s666 = scalar_lea.sflag [#allocation7], 1
    %667 = vsyncpa %s666, 1
    %668 = vsyncpa [#allocation5], 1
    %s669 = scalar_lea.sflag [#allocation5], 1
    %670 = vsyncpa %s669, 1

</llo_original>
